<compile_context>
chip_gen: v7x
topology: tpu7x:2x2x1
jax: 0.10.0
libtpu: 0.0.40
codegen_flags: <defaults>
</compile_context>

<pallas_src>
import numpy as np
import jax
import jax.numpy as jnp
from jax.experimental import pallas as pl
from jax.experimental.pallas import tpu as pltpu

# ---- static configuration (small shapes for the demo) ----
N, C_IN, H, W = 2, 3, 16, 16      # matches timm in_chans=3
HIDDEN = 32                       # synthetic backbone.head_hidden_size
NUM_CLASSES = 4                   # fc output dim
KH = KW = 3                       # conv kernel size
K = KH * KW * C_IN                # im2col contraction dim = 27
K_PAD = ((K + 7) // 8) * 8 or 8   # 32 -> sublane-aligned contraction dim
HW = H * W                        # 256 valid output positions per image
Q_TOT = N * HW                    # 512 flat valid positions (n, y, x)
QPAD = ((Q_TOT + 127) // 128) * 128   # 512 -> lane-dense (multiple of 128)

# static sanity (a shape change must not silently corrupt the layout)
assert K <= K_PAD and K_PAD % 8 == 0
assert QPAD % 128 == 0 and QPAD >= Q_TOT


def _make_pool_nq():
    """pool[n, q] = 1/HW iff flat valid position q belongs to image n, else 0
    (also zeroes any lane padding beyond Q_TOT).  Compile-time constant."""
    pool = np.zeros((N, QPAD), np.float32)
    for n in range(N):
        pool[n, n * HW:(n + 1) * HW] = 1.0 / HW
    return jnp.asarray(pool)


_POOL_NQ = _make_pool_nq()


def _fused_kernel(taps_ref, pool_ref, w_ref, bc_ref, wfc_ref, bfc_ref, out_ref):
    """Fused conv3x3 (+bias, ReLU) -> fc -> global-average-pool.

    taps_ref: (K_PAD, QPAD)         stacked im2col slab, lane-dense; row
                                    k = (dy*KW + dx)*C_IN + c.
    pool_ref: (N, QPAD)             1/HW block pooling matrix.
    w_ref:    (HIDDEN, K_PAD)       stacked conv weight (cols match slab rows).
    bc_ref:   (HIDDEN, 1)           conv bias (lane-broadcast).
    wfc_ref:  (NUM_CLASSES, HIDDEN) fc weight (nn.Linear layout).
    bfc_ref:  (1, NUM_CLASSES)      fc bias.
    out_ref:  (N, NUM_CLASSES)
    """
    # conv as ONE lane-dense NN matmul (accumulation happens inside the MXU).
    h_t = jnp.dot(w_ref[...], taps_ref[...],
                  preferred_element_type=jnp.float32)        # (HIDDEN, QPAD)
    h_t = jnp.maximum(h_t + bc_ref[...], 0.0)                # bias + ReLU

    # fc before the pool (both linear): reduce a (4, QPAD) tensor instead of
    # a (HIDDEN, QPAD) one.  NN natural form.
    rows_t = jnp.dot(wfc_ref[...], h_t,
                     preferred_element_type=jnp.float32)     # (4, QPAD)

    # global average pool as an MXU matmul with the pooling matrix:
    # out[n, o] = sum_q pool[n, q] * rows_t[o, q]   (tiny NT contraction)
    out = jax.lax.dot_general(
        pool_ref[...], rows_t,
        dimension_numbers=(((1,), (1,)), ((), ())),
        preferred_element_type=jnp.float32)                  # (N, NUM_CLASSES)
    out_ref[...] = (out + bfc_ref[...]).astype(out_ref.dtype)


def model_forward(x_nchw, w_stacked, bc, wfc, bfc):
    """Full forward pass. x_nchw: (N, 3, H, W) f32 -> (N, 4) f32."""
    # Single XLA prep fusion: zero-pad spatially and build the stacked im2col
    # slab (K_PAD, QPAD).  Row k = (dy*KW + dx)*C_IN + c holds the input value
    # under conv tap (dy, dx), channel c, for every valid output position
    # q = n*HW + y*W + x.  ~64 KiB of HBM, one DMA into the kernel.
    xp = jnp.pad(x_nchw, ((0, 0), (0, 0), (1, 1), (1, 1)))        # (N, C, H+2, W+2)
    taps = jnp.stack([xp[:, :, dy:dy + H, dx:dx + W]
                      for dy in range(KH) for dx in range(KW)],
                     axis=0)                                      # (9, N, C, H, W)
    taps = jnp.transpose(taps, (0, 2, 1, 3, 4)).reshape(K, Q_TOT)  # (27, 512)
    taps = jnp.pad(taps, ((0, K_PAD - K), (0, QPAD - Q_TOT)))      # (32, 512)

    vmem_spec = pl.BlockSpec(memory_space=pltpu.MemorySpace.VMEM)
    return pl.pallas_call(
        _fused_kernel,
        out_shape=jax.ShapeDtypeStruct((N, NUM_CLASSES), jnp.float32),
        in_specs=[vmem_spec] * 6,
        out_specs=vmem_spec,
    )(taps, _POOL_NQ, w_stacked, bc, wfc, bfc)


def init_params(key):
    """Deterministic parameter init (synthetic, not a checkpoint).
    Layouts match PyTorch: conv (out, in, kh, kw), linear (out, in)."""
    k1, k2, k3, k4 = jax.random.split(key, 4)
    wc = jax.random.normal(k1, (HIDDEN, C_IN, KH, KW), jnp.float32) * 0.1
    bc = jax.random.normal(k2, (HIDDEN,), jnp.float32) * 0.01
    wfc = jax.random.normal(k3, (NUM_CLASSES, HIDDEN), jnp.float32) * 0.1
    bfc = jax.random.normal(k4, (NUM_CLASSES,), jnp.float32) * 0.01
    return wc, bc, wfc, bfc


def prepare_params(wc, bc, wfc, bfc):
    """Host-side, once: reshape params into the kernel layouts.
    Stacked conv weight column k = (dy*KW + dx)*C_IN + c == wc[:, c, dy, dx]."""
    w_stacked = jnp.transpose(wc, (0, 2, 3, 1)).reshape(HIDDEN, K)   # (HIDDEN, 27)
    w_stacked = jnp.pad(w_stacked, ((0, 0), (0, K_PAD - K)))         # (HIDDEN, 32)
    return w_stacked, bc.reshape(HIDDEN, 1), wfc, bfc.reshape(1, NUM_CLASSES)


# ---- plain-JAX reference (used only for the correctness check in __main__) ----
def _im2col_3x3_same(x_nhwc):
    """(N, H, W, C) -> (N*H*W, KH*KW*C) patches, column order (dy, dx, c)."""
    n, h, w, c = x_nhwc.shape
    xp = jnp.pad(x_nhwc, ((0, 0), (1, 1), (1, 1), (0, 0)))
    cols = []
    for dy in range(KH):
        for dx in range(KW):
            cols.append(xp[:, dy:dy + h, dx:dx + w, :])
    return jnp.concatenate(cols, axis=-1).reshape(n * h * w, KH * KW * c)


if __name__ == "__main__":
    key = jax.random.PRNGKey(0)
    kx, kp = jax.random.split(key)
    x = jax.random.normal(kx, (N, C_IN, H, W), dtype=jnp.float32)
    wc, bc, wfc, bfc = init_params(kp)
    params = prepare_params(wc, bc, wfc, bfc)

    out = jax.jit(model_forward)(x, *params)
    out = jax.block_until_ready(out)
    assert out.shape == (N, NUM_CLASSES), out.shape

    # reference: im2col conv + bias + ReLU -> GAP -> fc (no Pallas)
    hp = jax.lax.Precision.HIGHEST
    # (o, c, dy, dx) -> (dy, dx, c, o) -> (K, HIDDEN), row k = (dy*KW + dx)*C + c
    wc_im2col = jnp.transpose(wc, (2, 3, 1, 0)).reshape(K, HIDDEN)
    patches = _im2col_3x3_same(jnp.transpose(x, (0, 2, 3, 1)))     # (N*H*W, K)
    h_ref = jnp.maximum(jnp.matmul(patches, wc_im2col, precision=hp) + bc[None, :], 0.0)
    feat_ref = jnp.mean(h_ref.reshape(N, HW, HIDDEN), axis=1)
    ref = jnp.matmul(feat_ref, wfc.T, precision=hp) + bfc[None, :]

    # In-kernel dots use the TPU default f32 matmul precision (ref is
    # HIGHEST); tolerance chosen so the check catches real bugs (O(0.1))
    # without flaking on MXU rounding.
    assert jnp.allclose(out, ref, atol=2e-4, rtol=2e-4), (out, ref)
    print("KERNEL_OK")
</pallas_src>

<mosaic_0001>
module attributes {stable_mosaic.version = 11 : i64} {
  func.func @_fused_kernel(%arg0: memref<32x512xf32, #tpu.memory_space<vmem>>, %arg1: memref<2x512xf32, #tpu.memory_space<vmem>>, %arg2: memref<32x32xf32, #tpu.memory_space<vmem>>, %arg3: memref<32x1xf32, #tpu.memory_space<vmem>>, %arg4: memref<4x32xf32, #tpu.memory_space<vmem>>, %arg5: memref<1x4xf32, #tpu.memory_space<vmem>>, %arg6: memref<2x4xf32, #tpu.memory_space<vmem>>) attributes {dimension_semantics = [], scalar_prefetch = 0 : i64, scratch_operands = 0 : i64, tpu.core_type = #tpu.core_type<tc>} {
    %c0 = arith.constant 0 : index
    %c0_0 = arith.constant 0 : index
    %0 = vector.load %arg2[%c0, %c0_0] : memref<32x32xf32, #tpu.memory_space<vmem>>, vector<32x32xf32>
    %c0_1 = arith.constant 0 : index
    %c0_2 = arith.constant 0 : index
    %1 = vector.load %arg0[%c0_1, %c0_2] : memref<32x512xf32, #tpu.memory_space<vmem>>, vector<32x512xf32>
    %cst = arith.constant dense<0.000000e+00> : vector<32x512xf32>
    %2 = tpu.matmul %0, %1, %cst {dimension_numbers = #tpu.dot_dimension_numbers<[1], [0], [0], [1], [0, 0, 1, 1], [], []>} : vector<32x32xf32>, vector<32x512xf32>, vector<32x512xf32> -> vector<32x512xf32>
    %c0_3 = arith.constant 0 : index
    %c0_4 = arith.constant 0 : index
    %3 = vector.load %arg3[%c0_3, %c0_4] : memref<32x1xf32, #tpu.memory_space<vmem>>, vector<32x1xf32>
    %4 = vector.broadcast %3 : vector<32x1xf32> to vector<32x512xf32>
    %5 = arith.addf %2, %4 : vector<32x512xf32>
    %cst_5 = arith.constant 0.000000e+00 : f32
    %6 = vector.broadcast %cst_5 : f32 to vector<32x512xf32>
    %7 = arith.maximumf %5, %6 : vector<32x512xf32>
    %c0_6 = arith.constant 0 : index
    %c0_7 = arith.constant 0 : index
    %8 = vector.load %arg4[%c0_6, %c0_7] : memref<4x32xf32, #tpu.memory_space<vmem>>, vector<4x32xf32>
    %cst_8 = arith.constant dense<0.000000e+00> : vector<4x512xf32>
    %9 = tpu.matmul %8, %7, %cst_8 {dimension_numbers = #tpu.dot_dimension_numbers<[1], [0], [0], [1], [0, 0, 1, 1], [], []>} : vector<4x32xf32>, vector<32x512xf32>, vector<4x512xf32> -> vector<4x512xf32>
    %c0_9 = arith.constant 0 : index
    %c0_10 = arith.constant 0 : index
    %10 = vector.load %arg1[%c0_9, %c0_10] : memref<2x512xf32, #tpu.memory_space<vmem>>, vector<2x512xf32>
    %cst_11 = arith.constant dense<0.000000e+00> : vector<2x4xf32>
    %11 = tpu.matmul %10, %9, %cst_11 {dimension_numbers = #tpu.dot_dimension_numbers<[1], [1], [0], [0], [0, 0, 1, 0], [], []>} : vector<2x512xf32>, vector<4x512xf32>, vector<2x4xf32> -> vector<2x4xf32>
    %c0_12 = arith.constant 0 : index
    %c0_13 = arith.constant 0 : index
    %12 = vector.load %arg5[%c0_12, %c0_13] : memref<1x4xf32, #tpu.memory_space<vmem>>, vector<1x4xf32>
    %13 = vector.broadcast %12 : vector<1x4xf32> to vector<2x4xf32>
    %14 = arith.addf %11, %13 : vector<2x4xf32>
    %c0_14 = arith.constant 0 : index
    %c0_15 = arith.constant 0 : index
    %15 = vector.load %arg6[%c0_14, %c0_15] : memref<2x4xf32, #tpu.memory_space<vmem>>, vector<2x4xf32>
    tpu.vector_store %arg6[%c0_14, %c0_15], %14 {strides = array<i32>} : memref<2x4xf32, #tpu.memory_space<vmem>>, vector<2x4xf32>,
    return
  }
}

</mosaic_0001>

<llo_original>
// kernel: model_forward.1
$region0: #{model_forward.1}
  #allocation0 [shape = 'u32[]', space=smem, size = 0x4, offset = 0x4, fixed_abs, tag = 'smem constant byte address 0x4 - core index']
  #allocation1 [shape = 'u32[144,128]{1,0:T(1,128)}', space=vmem, size = 0x12000, scoped, tag = 'internal scratch']
  %s0 = inlined_call_operand.vmem [shape: f32[32,512], index: 0, kind: input, shape index: {}]
  %s1 = inlined_call_operand.vmem [shape: f32[2,512], index: 1, kind: input, shape index: {}]
  %s2 = inlined_call_operand.vmem [shape: f32[32,32], index: 2, kind: input, shape index: {}]
  %s3 = inlined_call_operand.vmem [shape: f32[32,1], index: 3, kind: input, shape index: {}]
  %s4 = inlined_call_operand.vmem [shape: f32[4,32], index: 4, kind: input, shape index: {}]
  %s5 = inlined_call_operand.vmem [shape: f32[1,4], index: 5, kind: input, shape index: {}]
  %s6 = inlined_call_operand.hbm [shape: f32[2,4], index: 6, kind: output, shape index: {}]
  %s7 = sld [smem:[#allocation0]]
  $region34: #{model_forward.1} parent=0
    _
  %s9 = ssub.s32 1, %s7
  %s10 = scalar_select 0, %s9, %s7
  $region1: #{model_forward.1} parent=0
    #allocation2 [shape = 'u8[1024]{0}', space=vmem, size = 0x400, scoped, tag = 'output window, operand 0, single buffered']
    #allocation3 [shape = 's32[1]{0}', space=sflag, size = 0x4, scoped, tag = 'scoped memory for model_forward.1']
    %11 = vsyncpa [#allocation3], 0
    // Predicated region
    $region2: #{model_forward.1} parent=1 // pred_check
      _
    $region3: #{model_forward.1} parent=1 // pred_check_branch
      %13 = sbr.rel (0) target = $region5
    $region4: #{model_forward.1} parent=1 // pred_region
      _
    $region5: #{model_forward.1} parent=1 // pred_fallthru
      _
    // Predicated region
    $region6: #{model_forward.1} parent=1 // pred_check
      _
    $region7: #{model_forward.1} parent=1 // pred_check_branch
      %15 = sbr.rel (0) target = $region9
    $region8: #{model_forward.1} parent=1 // pred_region
      _
    $region9: #{model_forward.1} parent=1 // pred_fallthru
      _
    // Predicated region
    $region10: #{model_forward.1} parent=1 // pred_check
      _
    $region11: #{model_forward.1} parent=1 // pred_check_branch
      %17 = sbr.rel (0) target = $region13
    $region12: #{model_forward.1} parent=1 // pred_region
      _
    $region13: #{model_forward.1} parent=1 // pred_fallthru
      _
    // Predicated region
    $region14: #{model_forward.1} parent=1 // pred_check
      _
    $region15: #{model_forward.1} parent=1 // pred_check_branch
      %19 = sbr.rel (0) target = $region17
    $region16: #{model_forward.1} parent=1 // pred_region
      _
    $region17: #{model_forward.1} parent=1 // pred_fallthru
      _
    // Predicated region
    $region18: #{model_forward.1} parent=1 // pred_check
      _
    $region19: #{model_forward.1} parent=1 // pred_check_branch
      %21 = sbr.rel (0) target = $region21
    $region20: #{model_forward.1} parent=1 // pred_region
      _
    $region21: #{model_forward.1} parent=1 // pred_fallthru
      _
    // Predicated region
    $region22: #{model_forward.1} parent=1 // pred_check
      _
    $region23: #{model_forward.1} parent=1 // pred_check_branch
      %23 = sbr.rel (0) target = $region25
    $region24: #{model_forward.1} parent=1 // pred_region
      _
    $region25: #{model_forward.1} parent=1 // pred_fallthru
      _
    %v24 = vld [vmem:[%s2] sm:$0xff]
    %v25 = vld [vmem:[%s2 + $0x8] sm:$0xff]
    %v26 = vld [vmem:[%s2 + $0x10] sm:$0xff]
    %v27 = vld [vmem:[%s2 + $0x18] sm:$0xff]
    %v28 = vld [vmem:[%s0] sm:$0xff]
    %v29 = vld [vmem:[%s0 + $0x8] sm:$0xff]
    %v30 = vld [vmem:[%s0 + $0x10] sm:$0xff]
    %v31 = vld [vmem:[%s0 + $0x18] sm:$0xff]
    %v32 = vld [vmem:[%s0 + $0x20] sm:$0xff]
    %v33 = vld [vmem:[%s0 + $0x28] sm:$0xff]
    %v34 = vld [vmem:[%s0 + $0x30] sm:$0xff]
    %v35 = vld [vmem:[%s0 + $0x38] sm:$0xff]
    %v36 = vld [vmem:[%s0 + $0x40] sm:$0xff]
    %v37 = vld [vmem:[%s0 + $0x48] sm:$0xff]
    %v38 = vld [vmem:[%s0 + $0x50] sm:$0xff]
    %v39 = vld [vmem:[%s0 + $0x58] sm:$0xff]
    %v40 = vld [vmem:[%s0 + $0x60] sm:$0xff]
    %v41 = vld [vmem:[%s0 + $0x68] sm:$0xff]
    %v42 = vld [vmem:[%s0 + $0x70] sm:$0xff]
    %v43 = vld [vmem:[%s0 + $0x78] sm:$0xff]
    %v44 = vld [vmem:[%s3] sm:$0xff]
    %v45 = vld [vmem:[%s3 + $0x8] sm:$0xff]
    %v46 = vld [vmem:[%s3 + $0x10] sm:$0xff]
    %v47 = vld [vmem:[%s3 + $0x18] sm:$0xff]
    %49 = vset.pattern.permute.xlu0 0
    %50 = vperm.xlu0 %49, %v44
    %v51 = vpop.permute.xlu0 %50
    %54 = vset.pattern.permute.xlu0 0
    %55 = vperm.xlu0 %54, %v45
    %v56 = vpop.permute.xlu0 %55
    %59 = vset.pattern.permute.xlu0 0
    %60 = vperm.xlu0 %59, %v46
    %v61 = vpop.permute.xlu0 %60
    %64 = vset.pattern.permute.xlu0 0
    %65 = vperm.xlu0 %64, %v47
    %v66 = vpop.permute.xlu0 %65
    %vm68 = vcmask 261120
    %v70 = vsel %vm68, %v24, 0
    %v73 = vsel %vm68, %v25, 0
    %v76 = vsel %vm68, %v26, 0
    %v79 = vsel %vm68, %v27, 0
    %81 = vmatprep.subr.mxu0 %v29
    %82 = vmatpush1.msra.mxu0 %v28
    %83 = vmatprep.subr.mxu0 %v33
    %84 = vmatpush1.msra.mxu0 %v32
    %85 = vmatprep.subr.mxu0 %v37
    %86 = vmatpush1.msra.mxu0 %v36
    %87 = vmatprep.subr.mxu0 %v41
    %88 = vmatpush1.msra.mxu0 %v40
    %89 = vmatprep.subr.mxu0 0.0
    %90 = vmatpush1.msra.mxu0 0.0
    %91 = vmatprep.subr.mxu0 0.0
    %92 = vmatpush1.msra.mxu0 0.0
    %93 = vmatprep.subr.mxu0 0.0
    %94 = vmatpush1.msra.mxu0 0.0
    %95 = vmatprep.subr.mxu0 0.0
    %96 = vmatpush1.msra.mxu0 0.0
    %97 = vmatprep.subr.mxu0 0.0
    %98 = vmatpush1.msra.mxu0 0.0
    %99 = vmatprep.subr.mxu0 0.0
    %100 = vmatpush1.msra.mxu0 0.0
    %101 = vmatprep.subr.mxu0 0.0
    %102 = vmatpush1.msra.mxu0 0.0
    %103 = vmatprep.subr.mxu0 0.0
    %104 = vmatpush1.msra.mxu0 0.0
    %105 = vmatprep.subr.mxu0 0.0
    %106 = vmatpush1.msra.mxu0 0.0
    %107 = vmatprep.subr.mxu0 0.0
    %108 = vmatpush1.msra.mxu0 0.0
    %109 = vmatprep.subr.mxu0 0.0
    %110 = vmatpush1.msra.mxu0 0.0
    %111 = vmatprep.subr.mxu0 0.0
    %112 = vmatpush1.msra.mxu0 0.0
    %113 = vmatprep.subr.mxu0 0.0
    %114 = vmatpush1.msra.mxu0 0.0
    %115 = vmatprep.subr.mxu0 0.0
    %116 = vmatpush1.msra.mxu0 0.0
    %117 = vmatprep.subr.mxu0 0.0
    %118 = vmatpush1.msra.mxu0 0.0
    %119 = vmatprep.subr.mxu0 0.0
    %120 = vmatpush1.msra.mxu0 0.0
    %121 = vmatprep.subr.mxu0 0.0
    %122 = vmatpush1.msra.mxu0 0.0
    %123 = vmatprep.subr.mxu0 0.0
    %124 = vmatpush1.msra.mxu0 0.0
    %125 = vmatprep.subr.mxu0 0.0
    %126 = vmatpush1.msra.mxu0 0.0
    %127 = vmatprep.subr.mxu0 0.0
    %128 = vmatpush1.msra.mxu0 0.0
    %129 = vmatprep.subr.mxu0 0.0
    %130 = vmatpush1.msra.mxu0 0.0
    %131 = vmatprep.subr.mxu0 0.0
    %132 = vmatpush1.msra.mxu0 0.0
    %133 = vmatprep.subr.mxu0 0.0
    %134 = vmatpush1.msra.mxu0 0.0
    %135 = vmatprep.subr.mxu0 0.0
    %136 = vmatpush1.msra.mxu0 0.0
    %137 = vmatprep.subr.mxu0 0.0
    %138 = vmatpush1.msra.mxu0 0.0
    %139 = vmatprep.subr.mxu0 0.0
    %140 = vmatpush1.msra.mxu0 0.0
    %141 = vmatprep.subr.mxu0 0.0
    %142 = vmatpush1.msra.mxu0 0.0
    %143 = vmatprep.subr.mxu0 0.0
    %144 = vmatpush1.msra.mxu0 0.0
    %145 = vmatprep.mubr.f32.mxu0 0.0
    %146 = vmatmul.mubr.f32.gmra.mrb[0].mxu0 %v70
    %v147 = vpop.f32.mrb[0].mxu0
    %v148 = vadd.f32 %v51, %v147
    %v149 = vpop.f32.mrb[0].mxu0
    %v150 = vadd.f32 %v51, %v149
    %151 = vmatprep.mubr.f32.mxu0 0.0
    %152 = vmatmul.mubr.f32.gmra.mrb[0].mxu0 %v73
    %v153 = vpop.f32.mrb[0].mxu0
    %v154 = vadd.f32 %v56, %v153
    %v155 = vpop.f32.mrb[0].mxu0
    %v156 = vadd.f32 %v56, %v155
    %157 = vmatprep.mubr.f32.mxu0 0.0
    %158 = vmatmul.mubr.f32.gmra.mrb[0].mxu0 %v76
    %v159 = vpop.f32.mrb[0].mxu0
    %v160 = vadd.f32 %v61, %v159
    %v161 = vpop.f32.mrb[0].mxu0
    %v162 = vadd.f32 %v61, %v161
    %163 = vmatprep.mubr.f32.mxu0 0.0
    %164 = vmatmul.mubr.f32.gmra.mrb[0].mxu0 %v79
    %v165 = vpop.f32.mrb[0].mxu0
    %v166 = vadd.f32 %v66, %v165
    %v167 = vpop.f32.mrb[0].mxu0
    %v168 = vadd.f32 %v66, %v167
    %169 = vdwg.mxu0
    %170 = vmatprep.subr.mxu0 %v31
    %171 = vmatpush1.msra.mxu0 %v30
    %172 = vmatprep.subr.mxu0 %v35
    %173 = vmatpush1.msra.mxu0 %v34
    %174 = vmatprep.subr.mxu0 %v39
    %175 = vmatpush1.msra.mxu0 %v38
    %176 = vmatprep.subr.mxu0 %v43
    %177 = vmatpush1.msra.mxu0 %v42
    %178 = vmatprep.subr.mxu0 0.0
    %179 = vmatpush1.msra.mxu0 0.0
    %180 = vmatprep.subr.mxu0 0.0
    %181 = vmatpush1.msra.mxu0 0.0
    %182 = vmatprep.subr.mxu0 0.0
    %183 = vmatpush1.msra.mxu0 0.0
    %184 = vmatprep.subr.mxu0 0.0
    %185 = vmatpush1.msra.mxu0 0.0
    %186 = vmatprep.subr.mxu0 0.0
    %187 = vmatpush1.msra.mxu0 0.0
    %188 = vmatprep.subr.mxu0 0.0
    %189 = vmatpush1.msra.mxu0 0.0
    %190 = vmatprep.subr.mxu0 0.0
    %191 = vmatpush1.msra.mxu0 0.0
    %192 = vmatprep.subr.mxu0 0.0
    %193 = vmatpush1.msra.mxu0 0.0
    %194 = vmatprep.subr.mxu0 0.0
    %195 = vmatpush1.msra.mxu0 0.0
    %196 = vmatprep.subr.mxu0 0.0
    %197 = vmatpush1.msra.mxu0 0.0
    %198 = vmatprep.subr.mxu0 0.0
    %199 = vmatpush1.msra.mxu0 0.0
    %200 = vmatprep.subr.mxu0 0.0
    %201 = vmatpush1.msra.mxu0 0.0
    %202 = vmatprep.subr.mxu0 0.0
    %203 = vmatpush1.msra.mxu0 0.0
    %204 = vmatprep.subr.mxu0 0.0
    %205 = vmatpush1.msra.mxu0 0.0
    %206 = vmatprep.subr.mxu0 0.0
    %207 = vmatpush1.msra.mxu0 0.0
    %208 = vmatprep.subr.mxu0 0.0
    %209 = vmatpush1.msra.mxu0 0.0
    %210 = vmatprep.subr.mxu0 0.0
    %211 = vmatpush1.msra.mxu0 0.0
    %212 = vmatprep.subr.mxu0 0.0
    %213 = vmatpush1.msra.mxu0 0.0
    %214 = vmatprep.subr.mxu0 0.0
    %215 = vmatpush1.msra.mxu0 0.0
    %216 = vmatprep.subr.mxu0 0.0
    %217 = vmatpush1.msra.mxu0 0.0
    %218 = vmatprep.subr.mxu0 0.0
    %219 = vmatpush1.msra.mxu0 0.0
    %220 = vmatprep.subr.mxu0 0.0
    %221 = vmatpush1.msra.mxu0 0.0
    %222 = vmatprep.subr.mxu0 0.0
    %223 = vmatpush1.msra.mxu0 0.0
    %224 = vmatprep.subr.mxu0 0.0
    %225 = vmatpush1.msra.mxu0 0.0
    %226 = vmatprep.subr.mxu0 0.0
    %227 = vmatpush1.msra.mxu0 0.0
    %228 = vmatprep.subr.mxu0 0.0
    %229 = vmatpush1.msra.mxu0 0.0
    %230 = vmatprep.subr.mxu0 0.0
    %231 = vmatpush1.msra.mxu0 0.0
    %232 = vmatprep.subr.mxu0 0.0
    %233 = vmatpush1.msra.mxu0 0.0
    %234 = vmatprep.mubr.f32.mxu0 0.0
    %235 = vmatmul.mubr.f32.gmra.mrb[0].mxu0 %v70
    %v236 = vpop.f32.mrb[0].mxu0
    %v237 = vadd.f32 %v51, %v236
    %v238 = vpop.f32.mrb[0].mxu0
    %v239 = vadd.f32 %v51, %v238
    %240 = vmatprep.mubr.f32.mxu0 0.0
    %241 = vmatmul.mubr.f32.gmra.mrb[0].mxu0 %v73
    %v242 = vpop.f32.mrb[0].mxu0
    %v243 = vadd.f32 %v56, %v242
    %v244 = vpop.f32.mrb[0].mxu0
    %v245 = vadd.f32 %v56, %v244
    %246 = vmatprep.mubr.f32.mxu0 0.0
    %247 = vmatmul.mubr.f32.gmra.mrb[0].mxu0 %v76
    %v248 = vpop.f32.mrb[0].mxu0
    %v249 = vadd.f32 %v61, %v248
    %v250 = vpop.f32.mrb[0].mxu0
    %v251 = vadd.f32 %v61, %v250
    %252 = vmatprep.mubr.f32.mxu0 0.0
    %253 = vmatmul.mubr.f32.gmra.mrb[0].mxu0 %v79
    %v254 = vpop.f32.mrb[0].mxu0
    %v255 = vadd.f32 %v66, %v254
    %v256 = vpop.f32.mrb[0].mxu0
    %v257 = vadd.f32 %v66, %v256
    %258 = vdwg.mxu0
    %v259 = vmax.f32 %v148, 0.0
    %v260 = vmax.f32 %v150, 0.0
    %v261 = vmax.f32 %v237, 0.0
    %v262 = vmax.f32 %v239, 0.0
    %v263 = vmax.f32 %v154, 0.0
    %v264 = vmax.f32 %v156, 0.0
    %v265 = vmax.f32 %v243, 0.0
    %v266 = vmax.f32 %v245, 0.0
    %v267 = vmax.f32 %v160, 0.0
    %v268 = vmax.f32 %v162, 0.0
    %v269 = vmax.f32 %v249, 0.0
    %v270 = vmax.f32 %v251, 0.0
    %v271 = vmax.f32 %v166, 0.0
    %v272 = vmax.f32 %v168, 0.0
    %v273 = vmax.f32 %v255, 0.0
    %v274 = vmax.f32 %v257, 0.0
    %v275 = vld [vmem:[%s4] sm:$0xf]
    %v277 = vsel %vm68, %v275, 0
    %279 = vmatprep.subr.mxu0 %v260
    %280 = vmatpush1.msra.mxu0 %v259
    %281 = vmatprep.subr.mxu0 %v264
    %282 = vmatpush1.msra.mxu0 %v263
    %283 = vmatprep.subr.mxu0 %v268
    %284 = vmatpush1.msra.mxu0 %v267
    %285 = vmatprep.subr.mxu0 %v272
    %286 = vmatpush1.msra.mxu0 %v271
    %287 = vmatprep.subr.mxu0 0.0
    %288 = vmatpush1.msra.mxu0 0.0
    %289 = vmatprep.subr.mxu0 0.0
    %290 = vmatpush1.msra.mxu0 0.0
    %291 = vmatprep.subr.mxu0 0.0
    %292 = vmatpush1.msra.mxu0 0.0
    %293 = vmatprep.subr.mxu0 0.0
    %294 = vmatpush1.msra.mxu0 0.0
    %295 = vmatprep.subr.mxu0 0.0
    %296 = vmatpush1.msra.mxu0 0.0
    %297 = vmatprep.subr.mxu0 0.0
    %298 = vmatpush1.msra.mxu0 0.0
    %299 = vmatprep.subr.mxu0 0.0
    %300 = vmatpush1.msra.mxu0 0.0
    %301 = vmatprep.subr.mxu0 0.0
    %302 = vmatpush1.msra.mxu0 0.0
    %303 = vmatprep.subr.mxu0 0.0
    %304 = vmatpush1.msra.mxu0 0.0
    %305 = vmatprep.subr.mxu0 0.0
    %306 = vmatpush1.msra.mxu0 0.0
    %307 = vmatprep.subr.mxu0 0.0
    %308 = vmatpush1.msra.mxu0 0.0
    %309 = vmatprep.subr.mxu0 0.0
    %310 = vmatpush1.msra.mxu0 0.0
    %311 = vmatprep.subr.mxu0 0.0
    %312 = vmatpush1.msra.mxu0 0.0
    %313 = vmatprep.subr.mxu0 0.0
    %314 = vmatpush1.msra.mxu0 0.0
    %315 = vmatprep.subr.mxu0 0.0
    %316 = vmatpush1.msra.mxu0 0.0
    %317 = vmatprep.subr.mxu0 0.0
    %318 = vmatpush1.msra.mxu0 0.0
    %319 = vmatprep.subr.mxu0 0.0
    %320 = vmatpush1.msra.mxu0 0.0
    %321 = vmatprep.subr.mxu0 0.0
    %322 = vmatpush1.msra.mxu0 0.0
    %323 = vmatprep.subr.mxu0 0.0
    %324 = vmatpush1.msra.mxu0 0.0
    %325 = vmatprep.subr.mxu0 0.0
    %326 = vmatpush1.msra.mxu0 0.0
    %327 = vmatprep.subr.mxu0 0.0
    %328 = vmatpush1.msra.mxu0 0.0
    %329 = vmatprep.subr.mxu0 0.0
    %330 = vmatpush1.msra.mxu0 0.0
    %331 = vmatprep.subr.mxu0 0.0
    %332 = vmatpush1.msra.mxu0 0.0
    %333 = vmatprep.subr.mxu0 0.0
    %334 = vmatpush1.msra.mxu0 0.0
    %335 = vmatprep.subr.mxu0 0.0
    %336 = vmatpush1.msra.mxu0 0.0
    %337 = vmatprep.subr.mxu0 0.0
    %338 = vmatpush1.msra.mxu0 0.0
    %339 = vmatprep.subr.mxu0 0.0
    %340 = vmatpush1.msra.mxu0 0.0
    %341 = vmatprep.subr.mxu0 0.0
    %342 = vmatpush1.msra.mxu0 0.0
    %343 = vmatprep.mubr.f32.mxu0 0.0
    %344 = vmatmul.mubr.f32.gmra.mrb[0].mxu0 %v277
    %v345 = vpop.f32.mrb[0].mxu0
    %v346 = vadd.f32 0.0, %v345
    %v347 = vpop.f32.mrb[0].mxu0
    %v348 = vadd.f32 0.0, %v347
    %349 = vdwg.mxu0
    %350 = vmatprep.subr.mxu0 %v262
    %351 = vmatpush1.msra.mxu0 %v261
    %352 = vmatprep.subr.mxu0 %v266
    %353 = vmatpush1.msra.mxu0 %v265
    %354 = vmatprep.subr.mxu0 %v270
    %355 = vmatpush1.msra.mxu0 %v269
    %356 = vmatprep.subr.mxu0 %v274
    %357 = vmatpush1.msra.mxu0 %v273
    %358 = vmatprep.subr.mxu0 0.0
    %359 = vmatpush1.msra.mxu0 0.0
    %360 = vmatprep.subr.mxu0 0.0
    %361 = vmatpush1.msra.mxu0 0.0
    %362 = vmatprep.subr.mxu0 0.0
    %363 = vmatpush1.msra.mxu0 0.0
    %364 = vmatprep.subr.mxu0 0.0
    %365 = vmatpush1.msra.mxu0 0.0
    %366 = vmatprep.subr.mxu0 0.0
    %367 = vmatpush1.msra.mxu0 0.0
    %368 = vmatprep.subr.mxu0 0.0
    %369 = vmatpush1.msra.mxu0 0.0
    %370 = vmatprep.subr.mxu0 0.0
    %371 = vmatpush1.msra.mxu0 0.0
    %372 = vmatprep.subr.mxu0 0.0
    %373 = vmatpush1.msra.mxu0 0.0
    %374 = vmatprep.subr.mxu0 0.0
    %375 = vmatpush1.msra.mxu0 0.0
    %376 = vmatprep.subr.mxu0 0.0
    %377 = vmatpush1.msra.mxu0 0.0
    %378 = vmatprep.subr.mxu0 0.0
    %379 = vmatpush1.msra.mxu0 0.0
    %380 = vmatprep.subr.mxu0 0.0
    %381 = vmatpush1.msra.mxu0 0.0
    %382 = vmatprep.subr.mxu0 0.0
    %383 = vmatpush1.msra.mxu0 0.0
    %384 = vmatprep.subr.mxu0 0.0
    %385 = vmatpush1.msra.mxu0 0.0
    %386 = vmatprep.subr.mxu0 0.0
    %387 = vmatpush1.msra.mxu0 0.0
    %388 = vmatprep.subr.mxu0 0.0
    %389 = vmatpush1.msra.mxu0 0.0
    %390 = vmatprep.subr.mxu0 0.0
    %391 = vmatpush1.msra.mxu0 0.0
    %392 = vmatprep.subr.mxu0 0.0
    %393 = vmatpush1.msra.mxu0 0.0
    %394 = vmatprep.subr.mxu0 0.0
    %395 = vmatpush1.msra.mxu0 0.0
    %396 = vmatprep.subr.mxu0 0.0
    %397 = vmatpush1.msra.mxu0 0.0
    %398 = vmatprep.subr.mxu0 0.0
    %399 = vmatpush1.msra.mxu0 0.0
    %400 = vmatprep.subr.mxu0 0.0
    %401 = vmatpush1.msra.mxu0 0.0
    %402 = vmatprep.subr.mxu0 0.0
    %403 = vmatpush1.msra.mxu0 0.0
    %404 = vmatprep.subr.mxu0 0.0
    %405 = vmatpush1.msra.mxu0 0.0
    %406 = vmatprep.subr.mxu0 0.0
    %407 = vmatpush1.msra.mxu0 0.0
    %408 = vmatprep.subr.mxu0 0.0
    %409 = vmatpush1.msra.mxu0 0.0
    %410 = vmatprep.subr.mxu0 0.0
    %411 = vmatpush1.msra.mxu0 0.0
    %412 = vmatprep.subr.mxu0 0.0
    %413 = vmatpush1.msra.mxu0 0.0
    %414 = vmatprep.mubr.f32.mxu0 0.0
    %415 = vmatmul.mubr.f32.gmra.mrb[0].mxu0 %v277
    %v416 = vpop.f32.mrb[0].mxu0
    %v417 = vadd.f32 0.0, %v416
    %v418 = vpop.f32.mrb[0].mxu0
    %v419 = vadd.f32 0.0, %v418
    %420 = vdwg.mxu0
    %v421 = vld [vmem:[%s1] sm:$0xff]
    %v422 = vld [vmem:[%s5] sm:$0x1]
    %v424 = vlaneseq
    %v425 = vshrl.u32 %v424, 7
    %v426 = vsub.s32 0, %v425
    %v427 = vrot.slane %v422, %v426
    %v430 = vcombine.high %v421, %v421
    %v432 = vunpack.c.l.s4 1983009808
    %v433 = vunpack.c.0.s8 %v432
    %v434 = vlaneseq
    %v435 = vshrl.u32 %v434, 7
    %v436 = vsub.s32 %v433, %v435
    %v437 = vrot.slane %v421, %v436
    %v439 = vunpack.c.l.s4 1983009808
    %v440 = vunpack.c.0.s8 %v439
    %v441 = vlaneseq
    %v442 = vshrl.u32 %v441, 7
    %v443 = vsub.s32 %v440, %v442
    %v444 = vrot.slane %v430, %v443
    %v445 = vcombine.high %v437, %v437
    %v446 = vcombine.high %v444, %v444
    %451 = vmatprep.subr.mxu0 %v348
    %452 = vmatpush1.xpose.msra.mxu0 %v346
    %453 = vmatprep.subr.mxu0 0.0
    %454 = vmatpush1.xpose.msra.mxu0 0.0
    %455 = vmatprep.subr.mxu0 0.0
    %456 = vmatpush1.xpose.msra.mxu0 0.0
    %457 = vmatprep.subr.mxu0 0.0
    %458 = vmatpush1.xpose.msra.mxu0 0.0
    %459 = vmatprep.subr.mxu0 0.0
    %460 = vmatpush1.xpose.msra.mxu0 0.0
    %461 = vmatprep.subr.mxu0 0.0
    %462 = vmatpush1.xpose.msra.mxu0 0.0
    %463 = vmatprep.subr.mxu0 0.0
    %464 = vmatpush1.xpose.msra.mxu0 0.0
    %465 = vmatprep.subr.mxu0 0.0
    %466 = vmatpush1.xpose.msra.mxu0 0.0
    %467 = vmatprep.subr.mxu0 0.0
    %468 = vmatpush1.xpose.msra.mxu0 0.0
    %469 = vmatprep.subr.mxu0 0.0
    %470 = vmatpush1.xpose.msra.mxu0 0.0
    %471 = vmatprep.subr.mxu0 0.0
    %472 = vmatpush1.xpose.msra.mxu0 0.0
    %473 = vmatprep.subr.mxu0 0.0
    %474 = vmatpush1.xpose.msra.mxu0 0.0
    %475 = vmatprep.subr.mxu0 0.0
    %476 = vmatpush1.xpose.msra.mxu0 0.0
    %477 = vmatprep.subr.mxu0 0.0
    %478 = vmatpush1.xpose.msra.mxu0 0.0
    %479 = vmatprep.subr.mxu0 0.0
    %480 = vmatpush1.xpose.msra.mxu0 0.0
    %481 = vmatprep.subr.mxu0 0.0
    %482 = vmatpush1.xpose.msra.mxu0 0.0
    %483 = vmatprep.subr.mxu0 0.0
    %484 = vmatpush1.xpose.msra.mxu0 0.0
    %485 = vmatprep.subr.mxu0 0.0
    %486 = vmatpush1.xpose.msra.mxu0 0.0
    %487 = vmatprep.subr.mxu0 0.0
    %488 = vmatpush1.xpose.msra.mxu0 0.0
    %489 = vmatprep.subr.mxu0 0.0
    %490 = vmatpush1.xpose.msra.mxu0 0.0
    %491 = vmatprep.subr.mxu0 0.0
    %492 = vmatpush1.xpose.msra.mxu0 0.0
    %493 = vmatprep.subr.mxu0 0.0
    %494 = vmatpush1.xpose.msra.mxu0 0.0
    %495 = vmatprep.subr.mxu0 0.0
    %496 = vmatpush1.xpose.msra.mxu0 0.0
    %497 = vmatprep.subr.mxu0 0.0
    %498 = vmatpush1.xpose.msra.mxu0 0.0
    %499 = vmatprep.subr.mxu0 0.0
    %500 = vmatpush1.xpose.msra.mxu0 0.0
    %501 = vmatprep.subr.mxu0 0.0
    %502 = vmatpush1.xpose.msra.mxu0 0.0
    %503 = vmatprep.subr.mxu0 0.0
    %504 = vmatpush1.xpose.msra.mxu0 0.0
    %505 = vmatprep.subr.mxu0 0.0
    %506 = vmatpush1.xpose.msra.mxu0 0.0
    %507 = vmatprep.subr.mxu0 0.0
    %508 = vmatpush1.xpose.msra.mxu0 0.0
    %509 = vmatprep.subr.mxu0 0.0
    %510 = vmatpush1.xpose.msra.mxu0 0.0
    %511 = vmatprep.subr.mxu0 0.0
    %512 = vmatpush1.xpose.msra.mxu0 0.0
    %513 = vmatprep.subr.mxu0 0.0
    %514 = vmatpush1.xpose.msra.mxu0 0.0
    %515 = vmatprep.mubr.f32.mxu0 %v445
    %516 = vmatmul.mubr.f32.gmra.mrb[0].mxu0 %v437
    %v517 = vpop.f32.mrb[0].mxu0
    %v518 = vadd.f32 %v427, %v517
    %v519 = vpop.f32.mrb[0].mxu0
    %520 = vdwg.mxu0
    %521 = vmatprep.subr.mxu0 %v419
    %522 = vmatpush1.xpose.msra.mxu0 %v417
    %523 = vmatprep.subr.mxu0 0.0
    %524 = vmatpush1.xpose.msra.mxu0 0.0
    %525 = vmatprep.subr.mxu0 0.0
    %526 = vmatpush1.xpose.msra.mxu0 0.0
    %527 = vmatprep.subr.mxu0 0.0
    %528 = vmatpush1.xpose.msra.mxu0 0.0
    %529 = vmatprep.subr.mxu0 0.0
    %530 = vmatpush1.xpose.msra.mxu0 0.0
    %531 = vmatprep.subr.mxu0 0.0
    %532 = vmatpush1.xpose.msra.mxu0 0.0
    %533 = vmatprep.subr.mxu0 0.0
    %534 = vmatpush1.xpose.msra.mxu0 0.0
    %535 = vmatprep.subr.mxu0 0.0
    %536 = vmatpush1.xpose.msra.mxu0 0.0
    %537 = vmatprep.subr.mxu0 0.0
    %538 = vmatpush1.xpose.msra.mxu0 0.0
    %539 = vmatprep.subr.mxu0 0.0
    %540 = vmatpush1.xpose.msra.mxu0 0.0
    %541 = vmatprep.subr.mxu0 0.0
    %542 = vmatpush1.xpose.msra.mxu0 0.0
    %543 = vmatprep.subr.mxu0 0.0
    %544 = vmatpush1.xpose.msra.mxu0 0.0
    %545 = vmatprep.subr.mxu0 0.0
    %546 = vmatpush1.xpose.msra.mxu0 0.0
    %547 = vmatprep.subr.mxu0 0.0
    %548 = vmatpush1.xpose.msra.mxu0 0.0
    %549 = vmatprep.subr.mxu0 0.0
    %550 = vmatpush1.xpose.msra.mxu0 0.0
    %551 = vmatprep.subr.mxu0 0.0
    %552 = vmatpush1.xpose.msra.mxu0 0.0
    %553 = vmatprep.subr.mxu0 0.0
    %554 = vmatpush1.xpose.msra.mxu0 0.0
    %555 = vmatprep.subr.mxu0 0.0
    %556 = vmatpush1.xpose.msra.mxu0 0.0
    %557 = vmatprep.subr.mxu0 0.0
    %558 = vmatpush1.xpose.msra.mxu0 0.0
    %559 = vmatprep.subr.mxu0 0.0
    %560 = vmatpush1.xpose.msra.mxu0 0.0
    %561 = vmatprep.subr.mxu0 0.0
    %562 = vmatpush1.xpose.msra.mxu0 0.0
    %563 = vmatprep.subr.mxu0 0.0
    %564 = vmatpush1.xpose.msra.mxu0 0.0
    %565 = vmatprep.subr.mxu0 0.0
    %566 = vmatpush1.xpose.msra.mxu0 0.0
    %567 = vmatprep.subr.mxu0 0.0
    %568 = vmatpush1.xpose.msra.mxu0 0.0
    %569 = vmatprep.subr.mxu0 0.0
    %570 = vmatpush1.xpose.msra.mxu0 0.0
    %571 = vmatprep.subr.mxu0 0.0
    %572 = vmatpush1.xpose.msra.mxu0 0.0
    %573 = vmatprep.subr.mxu0 0.0
    %574 = vmatpush1.xpose.msra.mxu0 0.0
    %575 = vmatprep.subr.mxu0 0.0
    %576 = vmatpush1.xpose.msra.mxu0 0.0
    %577 = vmatprep.subr.mxu0 0.0
    %578 = vmatpush1.xpose.msra.mxu0 0.0
    %579 = vmatprep.subr.mxu0 0.0
    %580 = vmatpush1.xpose.msra.mxu0 0.0
    %581 = vmatprep.subr.mxu0 0.0
    %582 = vmatpush1.xpose.msra.mxu0 0.0
    %583 = vmatprep.subr.mxu0 0.0
    %584 = vmatpush1.xpose.msra.mxu0 0.0
    %585 = vmatprep.mubr.f32.mxu0 %v446
    %586 = vmatmul.mubr.f32.gmra.mrb[0].mxu0 %v444
    %v587 = vpop.f32.mrb[0].mxu0
    %v588 = vadd.f32 %v518, %v587
    %v589 = vpop.f32.mrb[0].mxu0
    %590 = vdwg.mxu0
    %vm591 = vcmask 25600
    %592 = vst.msk [vmem:[#allocation2] sm:$0x3] %vm591, %v588
    // Predicated region
    $region26: #{model_forward.1} parent=1 // pred_check
      _
    $region27: #{model_forward.1} parent=1 // pred_check_branch
      %594 = sbr.rel (0) target = $region29
    $region28: #{model_forward.1} parent=1 // pred_region
      %s596 = ssub.s32 32, 32
      %597 = vsyncadd [#allocation3], %s596
      %s599 = sshll.u32 [#allocation2], 4
      %s600 = int_to_ptr.vmem [resolvable:$true] %s599
      %602 = dma.vmem_to_hbm [thread:$0]  %s600, 32, %s6, [#allocation3]
    $region29: #{model_forward.1} parent=1 // pred_fallthru
      _
    // Predicated region
    $region30: #{model_forward.1} parent=1 // pred_check
      _
    $region31: #{model_forward.1} parent=1 // pred_check_branch
      %604 = sbr.rel (0) target = $region33
    $region32: #{model_forward.1} parent=1 // pred_region
      %605 = dma.done [#allocation3], 32
    $region33: #{model_forward.1} parent=1 // pred_fallthru
      _
    %606 = vsyncpa [#allocation3], 1

</llo_original>
